<compile_context>
chip_gen: v5e
topology: v5e:2x2
jax: 0.10.0
libtpu: 0.0.40
codegen_flags: <defaults>
</compile_context>

<pallas_src>
import functools
import math

import jax
import jax.numpy as jnp
from jax import lax
from jax.experimental import pallas as pl
from jax.experimental.pallas import tpu as pltpu

_NEG_INF = -1e30  # finite mask value: keeps online softmax NaN-free


# ------------------------- tiled projection matmul --------------------------
def _matmul_kernel(x_ref, w_ref, o_ref, acc_ref):
    @pl.when(pl.program_id(2) == 0)
    def _init():
        acc_ref[...] = jnp.zeros_like(acc_ref)

    acc_ref[...] += jnp.dot(x_ref[...], w_ref[...],
                            preferred_element_type=jnp.float32)

    @pl.when(pl.program_id(2) == pl.num_programs(2) - 1)
    def _store():
        o_ref[...] = acc_ref[...].astype(o_ref.dtype)


def _fit_tile(dim, cap):
    if dim <= cap:
        return dim
    t = cap
    while dim % t != 0:
        t //= 2
    return max(t, 1)


def pallas_matmul(x, w, *, tm=256, tn=256, tk=512):
    """x: (M, K) @ w: (K, N) -> (M, N); tiled + pipelined, f32 accumulation."""
    M, K = x.shape
    K2, N = w.shape
    assert K == K2
    tm, tn, tk = _fit_tile(M, tm), _fit_tile(N, tn), _fit_tile(K, tk)
    return pl.pallas_call(
        _matmul_kernel,
        grid=(M // tm, N // tn, K // tk),
        in_specs=[
            pl.BlockSpec((tm, tk), lambda i, j, k: (i, k)),
            pl.BlockSpec((tk, tn), lambda i, j, k: (k, j)),
        ],
        out_specs=pl.BlockSpec((tm, tn), lambda i, j, k: (i, j)),
        out_shape=jax.ShapeDtypeStruct((M, N), x.dtype),
        scratch_shapes=[pltpu.VMEM((tm, tn), jnp.float32)],
        compiler_params=pltpu.CompilerParams(
            dimension_semantics=("parallel", "parallel", "arbitrary")),
    )(x, w)


# ------------------------ flash attention (GQA + RoPE) -----------------------
def _flash_attention_kernel(q_ref, k_ref, v_ref, cq_ref, sq_ref, ck_ref, sk_ref,
                            o_ref, qr_ref, m_ref, l_ref, acc_ref, *,
                            tq, tk, head_dim, sliding_window, n_kv_iters):
    qi = pl.program_id(2)
    kj = pl.program_id(3)
    half = head_dim // 2

    def rope(x, cos, sin):
        # `sin` already carries the rotate_half sign pattern [-s, s].
        xr = jnp.concatenate([x[..., half:], x[..., :half]], axis=-1)
        return x * cos + xr * sin

    @pl.when(kj == 0)
    def _init():
        m_ref[...] = jnp.full_like(m_ref, _NEG_INF)
        l_ref[...] = jnp.zeros_like(l_ref)
        acc_ref[...] = jnp.zeros_like(acc_ref)
        # RoPE (with 1/sqrt(D) folded into the tables) once per q tile.
        q = q_ref[...].astype(jnp.float32)                        # (tq, n_rep, D)
        qr_ref[...] = rope(q, cq_ref[...][:, None, :],
                           sq_ref[...][:, None, :]).astype(qr_ref.dtype)

    # Absolute KV block this (qi, kj) iteration corresponds to.
    kv_hi = (qi * tq + tq - 1) // tk
    kv_lo = jnp.maximum(qi * tq - (sliding_window - 1), 0) // tk
    target = kv_hi - (n_kv_iters - 1) + kj

    @pl.when(target >= kv_lo)      # skip blocks fully outside the window
    def _compute():
        k = rope(k_ref[...].astype(jnp.float32), ck_ref[...], sk_ref[...])
        k = k.astype(k_ref.dtype)                                  # (tk, D)
        q = qr_ref[...]                                            # (tq, n_rep, D)

        s = lax.dot_general(q, k, (((2,), (1,)), ((), ())),
                            preferred_element_type=jnp.float32)    # (tq, n_rep, tk)

        # Causal + sliding-window mask, only for this (tq, tk) tile.
        row = qi * tq + lax.broadcasted_iota(jnp.int32, (tq, tk), 0)
        col = target * tk + lax.broadcasted_iota(jnp.int32, (tq, tk), 1)
        diff = row - col
        allowed = (diff >= 0) & (diff < sliding_window)
        s = jnp.where(allowed[:, None, :], s, _NEG_INF)

        m_prev = m_ref[...]
        m_new = jnp.maximum(m_prev, jnp.max(s, axis=-1, keepdims=True))
        alpha = jnp.exp(m_prev - m_new)
        p = jnp.exp(s - m_new)
        l_ref[...] = alpha * l_ref[...] + jnp.sum(p, axis=-1, keepdims=True)
        acc_ref[...] = alpha * acc_ref[...] + lax.dot_general(
            p.astype(v_ref.dtype), v_ref[...], (((2,), (0,)), ((), ())),
            preferred_element_type=jnp.float32)                    # (tq, n_rep, D)
        m_ref[...] = m_new

    @pl.when(kj == n_kv_iters - 1)
    def _finalize():
        # Deferred normalization: divide once per q tile.
        o_ref[...] = (acc_ref[...] *
                      pl.reciprocal(l_ref[...])).astype(o_ref.dtype)


# --------------------------------- wrapper -----------------------------------
def mistral_attention(hidden_states, params, *, num_heads, num_kv_heads,
                      head_dim, sliding_window, rope_theta,
                      q_block=128, kv_block=128):
    # TODO(synk): additive `attention_mask`, `past_key_value` cache and
    # dropout paths are not implemented (forward is exercised with defaults);
    # position_ids=None is treated as arange(seq_len).
    B, S, H = hidden_states.shape
    n_rep = num_heads // num_kv_heads
    dtype = hidden_states.dtype

    # ---- fused QKV projection: one tiled matmul, weights transposed once ----
    w_qkv = jnp.concatenate(
        [params["wq"], params["wk"], params["wv"]], axis=0).T    # (H, (nh+2nkv)*D)
    qkv = pallas_matmul(hidden_states.reshape(B * S, H), w_qkv)
    nq = num_heads * head_dim
    nk = num_kv_heads * head_dim
    # Q stays (B, S, n_kv, n_rep, D): heads are sliced by the BlockSpec.
    q = qkv[:, :nq].reshape(B, S, num_kv_heads, n_rep, head_dim)
    k = qkv[:, nq:nq + nk].reshape(B, S, num_kv_heads, head_dim).transpose(0, 2, 1, 3)
    v = qkv[:, nq + nk:].reshape(B, S, num_kv_heads, head_dim).transpose(0, 2, 1, 3)

    # ---- rotary tables (f32); rotate_half sign folded into sin, 1/sqrt(D)
    #      folded into the Q-side tables ----
    inv_freq = 1.0 / (rope_theta ** (
        jnp.arange(0, head_dim, 2, dtype=jnp.float32) / head_dim))
    freqs = jnp.arange(S, dtype=jnp.float32)[:, None] * inv_freq[None, :]
    cos_h, sin_h = jnp.cos(freqs), jnp.sin(freqs)
    cos_t = jnp.concatenate([cos_h, cos_h], axis=-1)              # (S, D)
    sin_t = jnp.concatenate([-sin_h, sin_h], axis=-1)             # sign-folded
    scale = 1.0 / math.sqrt(head_dim)
    cos_q, sin_q = cos_t * scale, sin_t * scale
    cos_k, sin_k = cos_t, sin_t

    tq = min(q_block, S)
    tk = min(kv_block, S)
    assert S % tq == 0 and S % tk == 0, "seq len must divide the block sizes"
    n_q_blocks = S // tq
    n_kv_blocks = S // tk
    # Max number of KV blocks a q tile can see through the sliding window.
    n_kv_iters = min(n_kv_blocks, (tq + sliding_window - 1 + tk - 1) // tk + 1)

    def kv_blk(qi, kj):
        # Last iteration lands on the diagonal block; earlier ones walk back
        # through the window.  Clamp so skipped iterations re-use one block
        # (no extra DMA); the kernel's pl.when skips their compute.
        kv_hi = (qi * tq + tq - 1) // tk
        kv_lo = jnp.maximum(qi * tq - (sliding_window - 1), 0) // tk
        return jnp.maximum(kv_hi - (n_kv_iters - 1) + kj, kv_lo)

    kernel = functools.partial(
        _flash_attention_kernel, tq=tq, tk=tk, head_dim=head_dim,
        sliding_window=sliding_window, n_kv_iters=n_kv_iters)

    out5 = pl.pallas_call(
        kernel,
        grid=(B, num_kv_heads, n_q_blocks, n_kv_iters),
        in_specs=[
            pl.BlockSpec((None, tq, None, n_rep, head_dim),
                         lambda b, h, qi, kj: (b, qi, h, 0, 0)),
            pl.BlockSpec((None, None, tk, head_dim),
                         lambda b, h, qi, kj: (b, h, kv_blk(qi, kj), 0)),
            pl.BlockSpec((None, None, tk, head_dim),
                         lambda b, h, qi, kj: (b, h, kv_blk(qi, kj), 0)),
            pl.BlockSpec((tq, head_dim), lambda b, h, qi, kj: (qi, 0)),
            pl.BlockSpec((tq, head_dim), lambda b, h, qi, kj: (qi, 0)),
            pl.BlockSpec((tk, head_dim), lambda b, h, qi, kj: (kv_blk(qi, kj), 0)),
            pl.BlockSpec((tk, head_dim), lambda b, h, qi, kj: (kv_blk(qi, kj), 0)),
        ],
        out_specs=pl.BlockSpec((None, tq, None, n_rep, head_dim),
                               lambda b, h, qi, kj: (b, qi, h, 0, 0)),
        out_shape=jax.ShapeDtypeStruct(
            (B, S, num_kv_heads, n_rep, head_dim), dtype),
        scratch_shapes=[
            pltpu.VMEM((tq, n_rep, head_dim), dtype),          # roped, scaled Q
            pltpu.VMEM((tq, n_rep, 1), jnp.float32),           # running max m
            pltpu.VMEM((tq, n_rep, 1), jnp.float32),           # running sum l
            pltpu.VMEM((tq, n_rep, head_dim), jnp.float32),    # output accum
        ],
        compiler_params=pltpu.CompilerParams(
            dimension_semantics=("parallel", "parallel", "parallel",
                                 "arbitrary")),
    )(q, k, v, cos_q, sin_q, cos_k, sin_k)

    # (B, S, n_kv, n_rep, D) -> (B*S, H) is a free reshape (no transpose).
    attn = out5.reshape(B * S, num_heads * head_dim)
    return pallas_matmul(attn, params["wo"].T).reshape(B, S, H)


# ------------------------- plain-JAX reference (check) -----------------------
def _reference(hidden_states, params, *, num_heads, num_kv_heads, head_dim,
               sliding_window, rope_theta):
    B, S, H = hidden_states.shape
    n_rep = num_heads // num_kv_heads
    q = (hidden_states @ params["wq"].T).reshape(B, S, num_heads, head_dim)
    k = (hidden_states @ params["wk"].T).reshape(B, S, num_kv_heads, head_dim)
    v = (hidden_states @ params["wv"].T).reshape(B, S, num_kv_heads, head_dim)
    q = q.transpose(0, 2, 1, 3)
    k = k.transpose(0, 2, 1, 3)
    v = v.transpose(0, 2, 1, 3)

    inv_freq = 1.0 / (rope_theta ** (
        jnp.arange(0, head_dim, 2, dtype=jnp.float32) / head_dim))
    freqs = jnp.einsum("i,j->ij", jnp.arange(S, dtype=jnp.float32), inv_freq)
    emb = jnp.concatenate([freqs, freqs], axis=-1)
    cos = jnp.cos(emb)[None, None]
    sin = jnp.sin(emb)[None, None]

    def rot_half(x):
        d = x.shape[-1] // 2
        return jnp.concatenate([-x[..., d:], x[..., :d]], axis=-1)

    q = q * cos + rot_half(q) * sin
    k = k * cos + rot_half(k) * sin

    k = jnp.repeat(k, n_rep, axis=1)
    v = jnp.repeat(v, n_rep, axis=1)

    w = jnp.einsum("bhqd,bhkd->bhqk", q, k) / math.sqrt(head_dim)
    qi = jnp.arange(S)[:, None]
    kj = jnp.arange(S)[None, :]
    allowed = (kj <= qi) & (kj >= qi - (sliding_window - 1))
    w = jnp.where(allowed[None, None], w, -jnp.inf)
    w = jax.nn.softmax(w, axis=-1)
    o = jnp.einsum("bhqk,bhkd->bhqd", w, v)
    o = o.transpose(0, 2, 1, 3).reshape(B, S, H)
    return o @ params["wo"].T


if __name__ == "__main__":
    B, S = 2, 16
    num_heads, num_kv_heads, head_dim = 4, 2, 32
    H = num_heads * head_dim            # hidden_size = 128
    sliding_window = 8
    rope_theta = 10000.0

    key = jax.random.PRNGKey(0)
    k1, k2, k3, k4, k5 = jax.random.split(key, 5)
    init = 0.02
    params = {
        "wq": init * jax.random.normal(k1, (num_heads * head_dim, H), jnp.float32),
        "wk": init * jax.random.normal(k2, (num_kv_heads * head_dim, H), jnp.float32),
        "wv": init * jax.random.normal(k3, (num_kv_heads * head_dim, H), jnp.float32),
        "wo": init * jax.random.normal(k4, (H, num_heads * head_dim), jnp.float32),
    }
    x = jax.random.normal(k5, (B, S, H), jnp.float32)

    ref = _reference(
        x, params, num_heads=num_heads, num_kv_heads=num_kv_heads,
        head_dim=head_dim, sliding_window=sliding_window, rope_theta=rope_theta)

    # Path 1: blocks clamp to the full (small) sequence -> single-tile flash.
    out = mistral_attention(
        x, params, num_heads=num_heads, num_kv_heads=num_kv_heads,
        head_dim=head_dim, sliding_window=sliding_window,
        rope_theta=rope_theta, q_block=128, kv_block=128)
    out = jax.block_until_ready(out)
    assert out.shape == (B, S, H)
    assert jnp.allclose(out, ref, atol=1e-3, rtol=1e-3), "mismatch (single block)"

    # Path 2: small tiles so the multi-block online-softmax + sliding-window
    # block-skipping code path is exercised too.
    out_tiled = mistral_attention(
        x, params, num_heads=num_heads, num_kv_heads=num_kv_heads,
        head_dim=head_dim, sliding_window=sliding_window,
        rope_theta=rope_theta, q_block=8, kv_block=8)
    out_tiled = jax.block_until_ready(out_tiled)
    assert jnp.allclose(out_tiled, ref, atol=1e-3, rtol=1e-3), "mismatch (tiled)"

    print("KERNEL_OK")
</pallas_src>

<mosaic_0001>
module attributes {stable_mosaic.version = 11 : i64} {
  func.func @_matmul_kernel(%arg0: i32, %arg1: i32, %arg2: i32, %arg3: memref<32x128xf32, #tpu.memory_space<vmem>>, %arg4: memref<128x256xf32, #tpu.memory_space<vmem>>, %arg5: memref<32x256xf32, #tpu.memory_space<vmem>>, %arg6: memref<32x256xf32, #tpu.memory_space<vmem>>) attributes {dimension_semantics = [#tpu.dimension_semantics<parallel>, #tpu.dimension_semantics<parallel>, #tpu.dimension_semantics<arbitrary>], iteration_bounds = array<i64: 1, 1, 1>, scalar_prefetch = 0 : i64, scratch_operands = 1 : i64, tpu.core_type = #tpu.core_type<tc>, window_params = [{transform_indices = @transform_0, window_bounds = array<i64: 32, 128>}, {transform_indices = @transform_1, window_bounds = array<i64: 128, 256>}, {transform_indices = @transform_2, window_bounds = array<i64: 32, 256>}]} {
    %c0_i32 = arith.constant 0 : i32
    %0 = arith.cmpi eq, %arg2, %c0_i32 : i32
    %1 = arith.extui %0 : i1 to i32
    %c0_i32_0 = arith.constant 0 : i32
    %2 = arith.cmpi ne, %1, %c0_i32_0 : i32
    scf.if %2 {
      %cst_10 = arith.constant 0.000000e+00 : f32
      %12 = vector.broadcast %cst_10 : f32 to vector<32x256xf32>
      %c0_11 = arith.constant 0 : index
      %c0_12 = arith.constant 0 : index
      %13 = vector.load %arg6[%c0_11, %c0_12] : memref<32x256xf32, #tpu.memory_space<vmem>>, vector<32x256xf32>
      tpu.vector_store %arg6[%c0_11, %c0_12], %12 {strides = array<i32>} : memref<32x256xf32, #tpu.memory_space<vmem>>, vector<32x256xf32>,
    } else {
    }
    %c0 = arith.constant 0 : index
    %c0_1 = arith.constant 0 : index
    %3 = vector.load %arg6[%c0, %c0_1] : memref<32x256xf32, #tpu.memory_space<vmem>>, vector<32x256xf32>
    %c0_2 = arith.constant 0 : index
    %c0_3 = arith.constant 0 : index
    %4 = vector.load %arg3[%c0_2, %c0_3] : memref<32x128xf32, #tpu.memory_space<vmem>>, vector<32x128xf32>
    %c0_4 = arith.constant 0 : index
    %c0_5 = arith.constant 0 : index
    %5 = vector.load %arg4[%c0_4, %c0_5] : memref<128x256xf32, #tpu.memory_space<vmem>>, vector<128x256xf32>
    %cst = arith.constant dense<0.000000e+00> : vector<32x256xf32>
    %6 = tpu.matmul %4, %5, %cst {dimension_numbers = #tpu.dot_dimension_numbers<[1], [0], [0], [1], [0, 0, 1, 1], [], []>} : vector<32x128xf32>, vector<128x256xf32>, vector<32x256xf32> -> vector<32x256xf32>
    %7 = arith.addf %3, %6 : vector<32x256xf32>
    %c0_6 = arith.constant 0 : index
    %c0_7 = arith.constant 0 : index
    %8 = vector.load %arg6[%c0_6, %c0_7] : memref<32x256xf32, #tpu.memory_space<vmem>>, vector<32x256xf32>
    tpu.vector_store %arg6[%c0_6, %c0_7], %7 {strides = array<i32>} : memref<32x256xf32, #tpu.memory_space<vmem>>, vector<32x256xf32>,
    %c0_i32_8 = arith.constant 0 : i32
    %9 = arith.cmpi eq, %arg2, %c0_i32_8 : i32
    %10 = arith.extui %9 : i1 to i32
    %c0_i32_9 = arith.constant 0 : i32
    %11 = arith.cmpi ne, %10, %c0_i32_9 : i32
    scf.if %11 {
      %c0_10 = arith.constant 0 : index
      %c0_11 = arith.constant 0 : index
      %12 = vector.load %arg6[%c0_10, %c0_11] : memref<32x256xf32, #tpu.memory_space<vmem>>, vector<32x256xf32>
      %c0_12 = arith.constant 0 : index
      %c0_13 = arith.constant 0 : index
      %13 = vector.load %arg5[%c0_12, %c0_13] : memref<32x256xf32, #tpu.memory_space<vmem>>, vector<32x256xf32>
      tpu.vector_store %arg5[%c0_12, %c0_13], %12 {strides = array<i32>} : memref<32x256xf32, #tpu.memory_space<vmem>>, vector<32x256xf32>,
    } else {
    }
    return
  }
  func.func @transform_0(%arg0: i32, %arg1: i32, %arg2: i32) -> (i32, i32) {
    %c0_i32 = arith.constant 0 : i32
    return %arg0, %arg2 : i32, i32
  }
  func.func @transform_1(%arg0: i32, %arg1: i32, %arg2: i32) -> (i32, i32) {
    %c0_i32 = arith.constant 0 : i32
    return %arg2, %arg1 : i32, i32
  }
  func.func @transform_2(%arg0: i32, %arg1: i32, %arg2: i32) -> (i32, i32) {
    %c0_i32 = arith.constant 0 : i32
    return %arg0, %arg1 : i32, i32
  }
}

</mosaic_0001>

<llo_original>
// kernel: tpu_custom_call.1
$region0: #{tpu_custom_call.1}
  #allocation0 [shape = 'u32[]', space=smem, size = 0x4, offset = 0x4, fixed_abs, tag = 'smem constant byte address 0x4 - core index']
  #allocation1 [shape = 'u32[72,128]{1,0:T(1,128)}', space=vmem, size = 0x9000, scoped, tag = 'internal scratch']
  #allocation2 [shape = 'f32[32,256]{1,0:T(8,128)}', space=vmem, size = 0x8000, scoped, tag = 'scratch operand']
  %s0 = inlined_call_operand.hbm [shape: f32[32,128], index: 0, kind: input, shape index: {}]
  %s1 = inlined_call_operand.hbm [shape: f32[128,256], index: 1, kind: input, shape index: {}]
  %s2 = inlined_call_operand.hbm [shape: f32[32,256], index: 2, kind: output, shape index: {}]
  %s3 = sld [smem:[#allocation0]]
  $region34: #{tpu_custom_call.1} parent=0
    _
  %s5 = ssub.s32 1, %s3
  %s6 = scalar_select 0, %s5, %s3
  $region1: #{tpu_custom_call.1} parent=0
    #allocation3 [shape = 'u8[16384]{0}', space=vmem, size = 0x4000, scoped, tag = 'input window, operand 0, single buffered']
    #allocation4 [shape = 's32[1]{0}', space=sflag, size = 0x4, scoped, tag = 'scoped memory for tpu_custom_call.1']
    #allocation5 [shape = 's32[1]{0}', space=sflag, size = 0x4, scoped, tag = 'scoped memory for tpu_custom_call.1']
    #allocation6 [shape = 'u8[131072]{0}', space=vmem, size = 0x20000, scoped, tag = 'input window, operand 1, single buffered']
    #allocation7 [shape = 's32[1]{0}', space=sflag, size = 0x4, scoped, tag = 'scoped memory for tpu_custom_call.1']
    #allocation8 [shape = 'u8[32768]{0}', space=vmem, size = 0x8000, scoped, tag = 'output window, operand 0, single buffered']
    %7 = vsyncpa [#allocation4], 0
    %8 = vsyncpa [#allocation7], 0
    %9 = vsyncpa [#allocation5], 0
    // Predicated region
    $region2: #{tpu_custom_call.1} parent=1 // pred_check
      _
    $region3: #{tpu_custom_call.1} parent=1 // pred_check_branch
      %11 = sbr.rel (0) target = $region5
    $region4: #{tpu_custom_call.1} parent=1 // pred_region
      %13 = vsyncadd [#allocation4], 0
      %s14 = sshll.u32 %s0, 4
      %s15 = int_to_ptr.hbm [resolvable:$true] %s14
      %s16 = sshll.u32 [#allocation3], 4
      %s17 = int_to_ptr.vmem [resolvable:$true] %s16
      %22 = dma.hbm_to_vmem [thread:$0]  %s15, 512, %s17, [#allocation4], 128, 128, 8
    $region5: #{tpu_custom_call.1} parent=1 // pred_fallthru
      _
    // Predicated region
    $region6: #{tpu_custom_call.1} parent=1 // pred_check
      _
    $region7: #{tpu_custom_call.1} parent=1 // pred_check_branch
      %24 = sbr.rel (0) target = $region9
    $region8: #{tpu_custom_call.1} parent=1 // pred_region
      %26 = vsyncadd [#allocation7], 0
      %s27 = sshll.u32 %s1, 4
      %s28 = int_to_ptr.hbm [resolvable:$true] %s27
      %s29 = sshll.u32 [#allocation6], 4
      %s30 = int_to_ptr.vmem [resolvable:$true] %s29
      %35 = dma.hbm_to_vmem [thread:$0]  %s28, 4096, %s30, [#allocation7], 256, 256, 16
    $region9: #{tpu_custom_call.1} parent=1 // pred_fallthru
      _
    // Predicated region
    $region10: #{tpu_custom_call.1} parent=1 // pred_check
      _
    $region11: #{tpu_custom_call.1} parent=1 // pred_check_branch
      %37 = sbr.rel (0) target = $region13
    $region12: #{tpu_custom_call.1} parent=1 // pred_region
      %39 = dma.done [#allocation4], 512
    $region13: #{tpu_custom_call.1} parent=1 // pred_fallthru
      _
    // Predicated region
    $region14: #{tpu_custom_call.1} parent=1 // pred_check
      _
    $region15: #{tpu_custom_call.1} parent=1 // pred_check_branch
      %41 = sbr.rel (0) target = $region17
    $region16: #{tpu_custom_call.1} parent=1 // pred_region
      %43 = dma.done [#allocation7], 4096
    $region17: #{tpu_custom_call.1} parent=1 // pred_fallthru
      _
    %p44 = scmp.eq.s32.totalorder 0, 0
    // Predicated region
    $region18: #{tpu_custom_call.1} parent=1 // pred_check
      %p45 = pneg %p44
    $region19: #{tpu_custom_call.1} parent=1 // pred_check_branch
      %47 = sbr.rel (%p45) target = $region21
    $region20: #{tpu_custom_call.1} parent=1 // pred_region
      %48 = vst [vmem:[#allocation2] sm:$0xff] 0.0
      %49 = vst [vmem:[#allocation2 + $0x8] sm:$0xff] 0.0
      %50 = vst [vmem:[#allocation2 + $0x10] sm:$0xff] 0.0
      %51 = vst [vmem:[#allocation2 + $0x18] sm:$0xff] 0.0
      %52 = vst [vmem:[#allocation2 + $0x20] sm:$0xff] 0.0
      %53 = vst [vmem:[#allocation2 + $0x28] sm:$0xff] 0.0
      %54 = vst [vmem:[#allocation2 + $0x30] sm:$0xff] 0.0
      %55 = vst [vmem:[#allocation2 + $0x38] sm:$0xff] 0.0
    $region21: #{tpu_custom_call.1} parent=1 // pred_fallthru
      _
    %v56 = vld [vmem:[#allocation2] sm:$0xff]
    %v57 = vld [vmem:[#allocation2 + $0x8] sm:$0xff]
    %v58 = vld [vmem:[#allocation2 + $0x10] sm:$0xff]
    %v59 = vld [vmem:[#allocation2 + $0x18] sm:$0xff]
    %v60 = vld [vmem:[#allocation2 + $0x20] sm:$0xff]
    %v61 = vld [vmem:[#allocation2 + $0x28] sm:$0xff]
    %v62 = vld [vmem:[#allocation2 + $0x30] sm:$0xff]
    %v63 = vld [vmem:[#allocation2 + $0x38] sm:$0xff]
    %v64 = vld [vmem:[#allocation3] sm:$0xff]
    %v65 = vld [vmem:[#allocation3 + $0x8] sm:$0xff]
    %v66 = vld [vmem:[#allocation3 + $0x10] sm:$0xff]
    %v67 = vld [vmem:[#allocation3 + $0x18] sm:$0xff]
    %v68 = vld [vmem:[#allocation6] sm:$0xff]
    %v69 = vld [vmem:[#allocation6 + $0x8] sm:$0xff]
    %v70 = vld [vmem:[#allocation6 + $0x10] sm:$0xff]
    %v71 = vld [vmem:[#allocation6 + $0x18] sm:$0xff]
    %v72 = vld [vmem:[#allocation6 + $0x20] sm:$0xff]
    %v73 = vld [vmem:[#allocation6 + $0x28] sm:$0xff]
    %v74 = vld [vmem:[#allocation6 + $0x30] sm:$0xff]
    %v75 = vld [vmem:[#allocation6 + $0x38] sm:$0xff]
    %v76 = vld [vmem:[#allocation6 + $0x40] sm:$0xff]
    %v77 = vld [vmem:[#allocation6 + $0x48] sm:$0xff]
    %v78 = vld [vmem:[#allocation6 + $0x50] sm:$0xff]
    %v79 = vld [vmem:[#allocation6 + $0x58] sm:$0xff]
    %v80 = vld [vmem:[#allocation6 + $0x60] sm:$0xff]
    %v81 = vld [vmem:[#allocation6 + $0x68] sm:$0xff]
    %v82 = vld [vmem:[#allocation6 + $0x70] sm:$0xff]
    %v83 = vld [vmem:[#allocation6 + $0x78] sm:$0xff]
    %v84 = vld [vmem:[#allocation6 + $0x80] sm:$0xff]
    %v85 = vld [vmem:[#allocation6 + $0x88] sm:$0xff]
    %v86 = vld [vmem:[#allocation6 + $0x90] sm:$0xff]
    %v87 = vld [vmem:[#allocation6 + $0x98] sm:$0xff]
    %v88 = vld [vmem:[#allocation6 + $0xa0] sm:$0xff]
    %v89 = vld [vmem:[#allocation6 + $0xa8] sm:$0xff]
    %v90 = vld [vmem:[#allocation6 + $0xb0] sm:$0xff]
    %v91 = vld [vmem:[#allocation6 + $0xb8] sm:$0xff]
    %v92 = vld [vmem:[#allocation6 + $0xc0] sm:$0xff]
    %v93 = vld [vmem:[#allocation6 + $0xc8] sm:$0xff]
    %v94 = vld [vmem:[#allocation6 + $0xd0] sm:$0xff]
    %v95 = vld [vmem:[#allocation6 + $0xd8] sm:$0xff]
    %v96 = vld [vmem:[#allocation6 + $0xe0] sm:$0xff]
    %v97 = vld [vmem:[#allocation6 + $0xe8] sm:$0xff]
    %v98 = vld [vmem:[#allocation6 + $0xf0] sm:$0xff]
    %v99 = vld [vmem:[#allocation6 + $0xf8] sm:$0xff]
    %100 = vmatpush.msra.mxu0 %v98
    %101 = vmatpush.msra.mxu0 %v96
    %102 = vmatpush.msra.mxu0 %v94
    %103 = vmatpush.msra.mxu0 %v92
    %104 = vmatpush.msra.mxu0 %v90
    %105 = vmatpush.msra.mxu0 %v88
    %106 = vmatpush.msra.mxu0 %v86
    %107 = vmatpush.msra.mxu0 %v84
    %108 = vmatpush.msra.mxu0 %v82
    %109 = vmatpush.msra.mxu0 %v80
    %110 = vmatpush.msra.mxu0 %v78
    %111 = vmatpush.msra.mxu0 %v76
    %112 = vmatpush.msra.mxu0 %v74
    %113 = vmatpush.msra.mxu0 %v72
    %114 = vmatpush.msra.mxu0 %v70
    %115 = vmatpush.msra.mxu0 %v68
    %116 = vmatmul.f32.gmra.mxu0 %v64
    %v117 = vpop.f32.mrf.mxu0
    %v118 = vadd.f32 0.0, %v117
    %119 = vmatmul.f32.gmra.mxu0 %v65
    %v120 = vpop.f32.mrf.mxu0
    %v121 = vadd.f32 0.0, %v120
    %122 = vmatmul.f32.gmra.mxu0 %v66
    %v123 = vpop.f32.mrf.mxu0
    %v124 = vadd.f32 0.0, %v123
    %125 = vmatmul.f32.gmra.mxu0 %v67
    %v126 = vpop.f32.mrf.mxu0
    %v127 = vadd.f32 0.0, %v126
    %128 = vdwg.mxu0
    %129 = vmatpush.msra.mxu0 %v99
    %130 = vmatpush.msra.mxu0 %v97
    %131 = vmatpush.msra.mxu0 %v95
    %132 = vmatpush.msra.mxu0 %v93
    %133 = vmatpush.msra.mxu0 %v91
    %134 = vmatpush.msra.mxu0 %v89
    %135 = vmatpush.msra.mxu0 %v87
    %136 = vmatpush.msra.mxu0 %v85
    %137 = vmatpush.msra.mxu0 %v83
    %138 = vmatpush.msra.mxu0 %v81
    %139 = vmatpush.msra.mxu0 %v79
    %140 = vmatpush.msra.mxu0 %v77
    %141 = vmatpush.msra.mxu0 %v75
    %142 = vmatpush.msra.mxu0 %v73
    %143 = vmatpush.msra.mxu0 %v71
    %144 = vmatpush.msra.mxu0 %v69
    %145 = vmatmul.f32.gmra.mxu0 %v64
    %v146 = vpop.f32.mrf.mxu0
    %v147 = vadd.f32 0.0, %v146
    %148 = vmatmul.f32.gmra.mxu0 %v65
    %v149 = vpop.f32.mrf.mxu0
    %v150 = vadd.f32 0.0, %v149
    %151 = vmatmul.f32.gmra.mxu0 %v66
    %v152 = vpop.f32.mrf.mxu0
    %v153 = vadd.f32 0.0, %v152
    %154 = vmatmul.f32.gmra.mxu0 %v67
    %v155 = vpop.f32.mrf.mxu0
    %v156 = vadd.f32 0.0, %v155
    %157 = vdwg.mxu0
    %v158 = vadd.f32 %v56, %v118
    %v159 = vadd.f32 %v57, %v147
    %v160 = vadd.f32 %v58, %v121
    %v161 = vadd.f32 %v59, %v150
    %v162 = vadd.f32 %v60, %v124
    %v163 = vadd.f32 %v61, %v153
    %v164 = vadd.f32 %v62, %v127
    %v165 = vadd.f32 %v63, %v156
    %166 = vst [vmem:[#allocation2] sm:$0xff] %v158
    %167 = vst [vmem:[#allocation2 + $0x8] sm:$0xff] %v159
    %168 = vst [vmem:[#allocation2 + $0x10] sm:$0xff] %v160
    %169 = vst [vmem:[#allocation2 + $0x18] sm:$0xff] %v161
    %170 = vst [vmem:[#allocation2 + $0x20] sm:$0xff] %v162
    %171 = vst [vmem:[#allocation2 + $0x28] sm:$0xff] %v163
    %172 = vst [vmem:[#allocation2 + $0x30] sm:$0xff] %v164
    %173 = vst [vmem:[#allocation2 + $0x38] sm:$0xff] %v165
    // Predicated region
    $region22: #{tpu_custom_call.1} parent=1 // pred_check
      %p174 = pneg %p44
    $region23: #{tpu_custom_call.1} parent=1 // pred_check_branch
      %176 = sbr.rel (%p174) target = $region25
    $region24: #{tpu_custom_call.1} parent=1 // pred_region
      %v177 = vld [vmem:[#allocation2] sm:$0xff]
      %v178 = vld [vmem:[#allocation2 + $0x8] sm:$0xff]
      %v179 = vld [vmem:[#allocation2 + $0x10] sm:$0xff]
      %v180 = vld [vmem:[#allocation2 + $0x18] sm:$0xff]
      %v181 = vld [vmem:[#allocation2 + $0x20] sm:$0xff]
      %v182 = vld [vmem:[#allocation2 + $0x28] sm:$0xff]
      %v183 = vld [vmem:[#allocation2 + $0x30] sm:$0xff]
      %v184 = vld [vmem:[#allocation2 + $0x38] sm:$0xff]
      %185 = vst [vmem:[#allocation8] sm:$0xff] %v177
      %186 = vst [vmem:[#allocation8 + $0x8] sm:$0xff] %v178
      %187 = vst [vmem:[#allocation8 + $0x10] sm:$0xff] %v179
      %188 = vst [vmem:[#allocation8 + $0x18] sm:$0xff] %v180
      %189 = vst [vmem:[#allocation8 + $0x20] sm:$0xff] %v181
      %190 = vst [vmem:[#allocation8 + $0x28] sm:$0xff] %v182
      %191 = vst [vmem:[#allocation8 + $0x30] sm:$0xff] %v183
      %192 = vst [vmem:[#allocation8 + $0x38] sm:$0xff] %v184
    $region25: #{tpu_custom_call.1} parent=1 // pred_fallthru
      _
    // Predicated region
    $region26: #{tpu_custom_call.1} parent=1 // pred_check
      _
    $region27: #{tpu_custom_call.1} parent=1 // pred_check_branch
      %194 = sbr.rel (0) target = $region29
    $region28: #{tpu_custom_call.1} parent=1 // pred_region
      %196 = vsyncadd [#allocation5], 0
      %s197 = sshll.u32 [#allocation8], 4
      %s198 = int_to_ptr.vmem [resolvable:$true] %s197
      %s199 = sshll.u32 %s2, 4
      %s200 = int_to_ptr.hbm [resolvable:$true] %s199
      %205 = dma.vmem_to_hbm [thread:$0]  %s198, 1024, %s200, [#allocation5], 256, 256, 16
    $region29: #{tpu_custom_call.1} parent=1 // pred_fallthru
      _
    // Predicated region
    $region30: #{tpu_custom_call.1} parent=1 // pred_check
      _
    $region31: #{tpu_custom_call.1} parent=1 // pred_check_branch
      %207 = sbr.rel (0) target = $region33
    $region32: #{tpu_custom_call.1} parent=1 // pred_region
      %209 = dma.done [#allocation5], 1024
    $region33: #{tpu_custom_call.1} parent=1 // pred_fallthru
      _
    %210 = vsyncpa [#allocation4], 1
    %211 = vsyncpa [#allocation7], 1
    %212 = vsyncpa [#allocation5], 1

</llo_original>
